<compile_context>
chip_gen: v6e
topology: v6e:2x2x1
jax: 0.10.0
libtpu: 0.0.40
codegen_flags: <defaults>
</compile_context>

<pallas_src>
import functools

import jax
import jax.numpy as jnp
from jax import lax
from jax.experimental import pallas as pl
from jax.experimental.pallas import tpu as pltpu


def _default_tile_bytes():
    """Per-generation input-tile target (amortize ~0.35us/step overhead)."""
    try:
        kind = jax.devices()[0].device_kind.lower()
    except Exception:
        kind = ""
    if "v7" in kind or "7x" in kind:
        return 8 * 1024 * 1024      # 3.2 TB/s HBM -> bigger tiles; 64 MiB VMEM
    if "v6" in kind:
        return 6 * 1024 * 1024      # 32 MiB scoped VMEM default
    return 4 * 1024 * 1024          # v5e: 16 MiB scoped VMEM default


def _make_mean_pool_kernel(*, inv_n, n_total, tn, has_tail, node_axis,
                           use_scratch):
    def kernel(x_ref, o_ref, *scratch):
        # x_ref:   (TB, TN, TF) chunk of node features
        # o_ref:   (TB, TF)     pooled features (resident across node chunks)
        # scratch: optional (TB, TF) f32 accumulator for sub-f32 inputs
        k = pl.program_id(node_axis)
        acc_ref = scratch[0] if use_scratch else o_ref

        @pl.when(k == 0)
        def _():
            acc_ref[...] = jnp.zeros_like(acc_ref)

        x = x_ref[...].astype(jnp.float32)
        if has_tail:
            # Last node chunk extends past N; OOB block reads are undefined on
            # TPU, so zero the invalid rows before accumulating.
            remaining = n_total - k * tn
            node_idx = lax.broadcasted_iota(jnp.int32, x.shape, 1)
            x = jnp.where(node_idx < remaining, x, 0.0)

        acc_ref[...] += jnp.sum(x, axis=1)

        @pl.when(k == pl.num_programs(node_axis) - 1)
        def _():
            if use_scratch:
                o_ref[...] = (acc_ref[...] * inv_n).astype(o_ref.dtype)
            else:
                o_ref[...] = acc_ref[...] * inv_n   # acc_ref IS o_ref (f32)

    return kernel


def graph_mean_pool(x, *, tile_bytes=None):
    """Mean-pool node features per graph.

    Args:
      x: [B, N, F] node features.
      tile_bytes: target size of one (TB, TN, TF) input tile in VMEM
        (default: chosen per TPU generation).
    Returns:
      [B, F] per-graph mean of node features.
    """
    if tile_bytes is None:
        tile_bytes = _default_tile_bytes()

    dtype = x.dtype
    itemsize = jnp.dtype(dtype).itemsize
    use_scratch = jnp.dtype(dtype) != jnp.dtype(jnp.float32)
    # Packed-sublane row multiple: 8 for f32, 16 for bf16, 32 for int8/fp8.
    sub_mult = 8 * max(1, 4 // itemsize)

    B, N, F = x.shape
    orig_B = B

    # ---- batch tiling -------------------------------------------------------
    # 8 graphs per step when aligned (sublane-dense output rows).  When B is
    # not a multiple of 8, a single full-B block is legal (3rd-from-last input
    # dim has no alignment rule; a full-dim output block is allowed) -- unless
    # that would force an oversized minimum tile, in which case we pad B only.
    if B % 8 != 0 and B * sub_mult * F * itemsize > (8 << 20):
        pad_b = (-B) % 8
        x = jnp.pad(x, ((0, pad_b), (0, 0), (0, 0)))   # cheap: batch axis only
        B = B + pad_b
    TB = 8 if (B % 8 == 0) else B
    nb = B // TB

    # ---- feature tiling -----------------------------------------------------
    # Full-F lane block by default (block dim equal to the full array dim is
    # legal).  If the batch axis can't feed 2 TensorCores (v7x), split F into
    # multiple-of-128 slabs as a second parallel grid axis.
    if nb < 2 and F % 128 == 0 and F >= 256:
        n128 = F // 128
        nf = 2 if n128 % 2 == 0 else n128
    else:
        nf = 1
    TF = F // nf

    # ---- node-axis chunking -------------------------------------------------
    tn_target = max(sub_mult, tile_bytes // max(1, TB * TF * itemsize))
    TN = max(sub_mult, (tn_target // sub_mult) * sub_mult)
    if TN >= N:
        TN = N                       # full-dim block: legal even if unaligned
    nk = pl.cdiv(N, TN)
    has_tail = (N % TN) != 0

    # ---- grid / specs -------------------------------------------------------
    if nf > 1:
        grid = (nb, nf, nk)
        node_axis = 2
        in_specs = [pl.BlockSpec((TB, TN, TF), lambda b, f, k: (b, k, f))]
        out_specs = pl.BlockSpec((TB, TF), lambda b, f, k: (b, f))
        semantics = ("parallel", "parallel", "arbitrary")
    else:
        grid = (nb, nk)
        node_axis = 1
        in_specs = [pl.BlockSpec((TB, TN, F), lambda b, k: (b, k, 0))]
        out_specs = pl.BlockSpec((TB, F), lambda b, k: (b, 0))
        semantics = ("parallel", "arbitrary")

    scratch_shapes = (
        [pltpu.VMEM((TB, TF), jnp.float32)] if use_scratch else [])

    # VMEM budget: double-buffered input tile + accumulator + output, with
    # headroom; clamped to stay valid on every generation.
    in_tile = TB * TN * TF * itemsize
    out_tile = TB * TF * itemsize
    acc_bytes = TB * TF * 4 if use_scratch else 0
    vmem_limit = int(2.5 * in_tile) + 2 * out_tile + acc_bytes + (1 << 20)
    vmem_limit = min(max(vmem_limit, 16 << 20), 40 << 20)

    kernel = _make_mean_pool_kernel(
        inv_n=1.0 / N, n_total=N, tn=TN, has_tail=has_tail,
        node_axis=node_axis, use_scratch=use_scratch)

    out = pl.pallas_call(
        kernel,
        out_shape=jax.ShapeDtypeStruct((B, F), dtype),
        grid_spec=pltpu.PrefetchScalarGridSpec(
            num_scalar_prefetch=0,
            grid=grid,
            in_specs=in_specs,
            out_specs=out_specs,
            scratch_shapes=scratch_shapes,
        ),
        compiler_params=pltpu.CompilerParams(
            dimension_semantics=semantics,
            vmem_limit_bytes=vmem_limit),
        cost_estimate=pl.CostEstimate(
            flops=int(B) * int(N) * int(F),
            transcendentals=0,
            bytes_accessed=int(B) * int(N) * int(F) * itemsize
            + int(B) * int(F) * itemsize),
    )(x)

    if B != orig_B:
        out = out[:orig_B]
    return out


if __name__ == "__main__":
    key = jax.random.PRNGKey(0)

    # 1) Small aligned-F case: 2 graphs, 16 nodes, 128 features (f32, single
    #    node chunk, full-B block, no scratch).
    B, N, F = 2, 16, 128
    x = jax.random.normal(key, (B, N, F), dtype=jnp.float32)
    out = jax.block_until_ready(graph_mean_pool(x))
    ref = jnp.mean(x, axis=1)
    assert out.shape == (B, F)
    assert jnp.allclose(out, ref, atol=1e-5, rtol=1e-5)

    # 2) Fully unaligned dims (no wrapper padding anywhere): full-dim blocks.
    B2, N2, F2 = 3, 20, 96
    x2 = jax.random.normal(jax.random.PRNGKey(1), (B2, N2, F2),
                           dtype=jnp.float32)
    out2 = jax.block_until_ready(graph_mean_pool(x2))
    ref2 = jnp.mean(x2, axis=1)
    assert out2.shape == (B2, F2)
    assert jnp.allclose(out2, ref2, atol=1e-5, rtol=1e-5)

    # 3) bf16, multi-chunk node axis with a masked tail (exercises the f32
    #    scratch accumulator + in-kernel iota mask).  Small tile_bytes forces
    #    TN < N at these toy shapes.
    B3, N3, F3 = 8, 50, 128
    x3 = jax.random.normal(jax.random.PRNGKey(2), (B3, N3, F3),
                           dtype=jnp.bfloat16)
    out3 = jax.block_until_ready(graph_mean_pool(x3, tile_bytes=32 * 1024))
    ref3 = jnp.mean(x3.astype(jnp.float32), axis=1)
    assert out3.shape == (B3, F3)
    assert jnp.allclose(out3.astype(jnp.float32), ref3, atol=2e-2, rtol=2e-2)

    # 4) f32, feature-axis split (small batch -> 2 parallel F slabs) plus a
    #    masked node tail; accumulates directly into the output block.
    B4, N4, F4 = 4, 37, 256
    x4 = jax.random.normal(jax.random.PRNGKey(3), (B4, N4, F4),
                           dtype=jnp.float32)
    out4 = jax.block_until_ready(graph_mean_pool(x4, tile_bytes=32 * 1024))
    ref4 = jnp.mean(x4, axis=1)
    assert out4.shape == (B4, F4)
    assert jnp.allclose(out4, ref4, atol=1e-5, rtol=1e-5)

    print("KERNEL_OK")
</pallas_src>

<mosaic_0001>
module attributes {stable_mosaic.version = 11 : i64} {
  func.func @kernel(%arg0: i32, %arg1: i32, %arg2: memref<2x16x128xf32, #tpu.memory_space<vmem>>, %arg3: memref<2x128xf32, #tpu.memory_space<vmem>>) attributes {dimension_semantics = [#tpu.dimension_semantics<parallel>, #tpu.dimension_semantics<arbitrary>], iteration_bounds = array<i64: 1, 1>, scalar_prefetch = 0 : i64, scratch_operands = 0 : i64, tpu.core_type = #tpu.core_type<tc>, window_params = [{transform_indices = @transform_0, window_bounds = array<i64: 2, 16, 128>}, {transform_indices = @transform_1, window_bounds = array<i64: 2, 128>}]} {
    %c0_i32 = arith.constant 0 : i32
    %0 = arith.cmpi eq, %arg1, %c0_i32 : i32
    %1 = arith.extui %0 : i1 to i32
    %c0_i32_0 = arith.constant 0 : i32
    %2 = arith.cmpi ne, %1, %c0_i32_0 : i32
    scf.if %2 {
      %cst_9 = arith.constant 0.000000e+00 : f32
      %11 = vector.broadcast %cst_9 : f32 to vector<2x128xf32>
      %c0_10 = arith.constant 0 : index
      %c0_11 = arith.constant 0 : index
      %12 = vector.load %arg3[%c0_10, %c0_11] : memref<2x128xf32, #tpu.memory_space<vmem>>, vector<2x128xf32>
      tpu.vector_store %arg3[%c0_10, %c0_11], %11 {strides = array<i32>} : memref<2x128xf32, #tpu.memory_space<vmem>>, vector<2x128xf32>,
    } else {
    }
    %c0 = arith.constant 0 : index
    %c0_1 = arith.constant 0 : index
    %c0_2 = arith.constant 0 : index
    %3 = vector.load %arg2[%c0, %c0_1, %c0_2] : memref<2x16x128xf32, #tpu.memory_space<vmem>>, vector<2x16x128xf32>
    %c0_3 = arith.constant 0 : index
    %c0_4 = arith.constant 0 : index
    %4 = vector.load %arg3[%c0_3, %c0_4] : memref<2x128xf32, #tpu.memory_space<vmem>>, vector<2x128xf32>
    %cst = arith.constant dense<0.000000e+00> : vector<2x128xf32>
    %5 = vector.multi_reduction <add>, %3, %cst [1] : vector<2x16x128xf32> to vector<2x128xf32>
    %6 = arith.addf %4, %5 : vector<2x128xf32>
    %c0_5 = arith.constant 0 : index
    %c0_6 = arith.constant 0 : index
    %7 = vector.load %arg3[%c0_5, %c0_6] : memref<2x128xf32, #tpu.memory_space<vmem>>, vector<2x128xf32>
    tpu.vector_store %arg3[%c0_5, %c0_6], %6 {strides = array<i32>} : memref<2x128xf32, #tpu.memory_space<vmem>>, vector<2x128xf32>,
    %c0_i32_7 = arith.constant 0 : i32
    %8 = arith.cmpi eq, %arg1, %c0_i32_7 : i32
    %9 = arith.extui %8 : i1 to i32
    %c0_i32_8 = arith.constant 0 : i32
    %10 = arith.cmpi ne, %9, %c0_i32_8 : i32
    scf.if %10 {
      %c0_9 = arith.constant 0 : index
      %c0_10 = arith.constant 0 : index
      %11 = vector.load %arg3[%c0_9, %c0_10] : memref<2x128xf32, #tpu.memory_space<vmem>>, vector<2x128xf32>
      %cst_11 = arith.constant 6.250000e-02 : f32
      %12 = vector.broadcast %cst_11 : f32 to vector<2x128xf32>
      %13 = arith.mulf %11, %12 : vector<2x128xf32>
      %c0_12 = arith.constant 0 : index
      %c0_13 = arith.constant 0 : index
      %14 = vector.load %arg3[%c0_12, %c0_13] : memref<2x128xf32, #tpu.memory_space<vmem>>, vector<2x128xf32>
      tpu.vector_store %arg3[%c0_12, %c0_13], %13 {strides = array<i32>} : memref<2x128xf32, #tpu.memory_space<vmem>>, vector<2x128xf32>,
    } else {
    }
    return
  }
  func.func @transform_0(%arg0: i32, %arg1: i32) -> (i32, i32, i32) {
    %c0_i32 = arith.constant 0 : i32
    %c0_i32_0 = arith.constant 0 : i32
    return %arg0, %arg1, %c0_i32 : i32, i32, i32
  }
  func.func @transform_1(%arg0: i32, %arg1: i32) -> (i32, i32) {
    %c0_i32 = arith.constant 0 : i32
    %c0_i32_0 = arith.constant 0 : i32
    return %arg0, %c0_i32 : i32, i32
  }
}

</mosaic_0001>

<llo_original>
// kernel: tpu_custom_call.1
$region0: #{tpu_custom_call.1}
  #allocation0 [shape = 'u32[]', space=smem, size = 0x4, offset = 0x4, fixed_abs, tag = 'smem constant byte address 0x4 - core index']
  #allocation1 [shape = 'u32[144,128]{1,0:T(1,128)}', space=vmem, size = 0x12000, scoped, tag = 'internal scratch']
  %s0 = inlined_call_operand.hbm [shape: f32[2,16,128], index: 0, kind: input, shape index: {}]
  %s1 = inlined_call_operand.hbm [shape: f32[2,128], index: 1, kind: output, shape index: {}]
  %s2 = sld [smem:[#allocation0]]
  $region26: #{tpu_custom_call.1} parent=0
    _
  %s4 = ssub.s32 1, %s2
  %s5 = scalar_select 0, %s4, %s2
  $region1: #{tpu_custom_call.1} parent=0
    #allocation2 [shape = 'u8[16384]{0}', space=vmem, size = 0x4000, scoped, tag = 'input window, operand 0, single buffered']
    #allocation3 [shape = 's32[1]{0}', space=sflag, size = 0x4, scoped, tag = 'scoped memory for tpu_custom_call.1']
    #allocation4 [shape = 's32[1]{0}', space=sflag, size = 0x4, scoped, tag = 'scoped memory for tpu_custom_call.1']
    #allocation5 [shape = 'u8[1024]{0}', space=vmem, size = 0x400, scoped, tag = 'output window, operand 0, single buffered']
    %6 = vsyncpa [#allocation3], 0
    %7 = vsyncpa [#allocation4], 0
    // Predicated region
    $region2: #{tpu_custom_call.1} parent=1 // pred_check
      _
    $region3: #{tpu_custom_call.1} parent=1 // pred_check_branch
      %9 = sbr.rel (0) target = $region5
    $region4: #{tpu_custom_call.1} parent=1 // pred_region
      %s11 = ssub.s32 512, 512
      %12 = vsyncadd [#allocation3], %s11
      %s13 = sshll.u32 [#allocation2], 4
      %s14 = int_to_ptr.vmem [resolvable:$true] %s13
      %19 = dma.hbm_to_vmem [thread:$0]  %s0, 512, %s14, [#allocation3], 128, 128, 8
    $region5: #{tpu_custom_call.1} parent=1 // pred_fallthru
      _
    // Predicated region
    $region6: #{tpu_custom_call.1} parent=1 // pred_check
      _
    $region7: #{tpu_custom_call.1} parent=1 // pred_check_branch
      %21 = sbr.rel (0) target = $region9
    $region8: #{tpu_custom_call.1} parent=1 // pred_region
      %22 = dma.done [#allocation3], 512
    $region9: #{tpu_custom_call.1} parent=1 // pred_fallthru
      _
    %p23 = scmp.eq.s32.totalorder 0, 0
    // Predicated region
    $region10: #{tpu_custom_call.1} parent=1 // pred_check
      %p24 = pneg %p23
    $region11: #{tpu_custom_call.1} parent=1 // pred_check_branch
      %26 = sbr.rel (%p24) target = $region13
    $region12: #{tpu_custom_call.1} parent=1 // pred_region
      %27 = vst [vmem:[#allocation5] sm:$0x3] 0.0
    $region13: #{tpu_custom_call.1} parent=1 // pred_fallthru
      _
    %v28 = vld [vmem:[#allocation2] sm:$0xff]
    %v29 = vld [vmem:[#allocation2 + $0x8] sm:$0xff]
    %v30 = vld [vmem:[#allocation2 + $0x10] sm:$0xff]
    %v31 = vld [vmem:[#allocation2 + $0x18] sm:$0xff]
    %v32 = vld [vmem:[#allocation5] sm:$0x3]
    %v33 = vadd.f32 %v28, %v29
    %v34 = vrot.slane %v33, 4
    %v35 = vadd.f32 %v33, %v34
    %v36 = vrot.slane %v35, 2
    %v37 = vadd.f32 %v35, %v36
    %v38 = vrot.slane %v37, 1
    %v39 = vadd.f32 %v37, %v38
    %v40 = vadd.f32 %v30, %v31
    %v41 = vrot.slane %v40, 4
    %v42 = vadd.f32 %v40, %v41
    %v43 = vrot.slane %v42, 2
    %v44 = vadd.f32 %v42, %v43
    %v45 = vrot.slane %v44, 1
    %v46 = vadd.f32 %v44, %v45
    %vm49 = vcmask 1041409
    %v50 = vsel %vm49, %v46, %v39
    %v52 = vadd.f32 %v32, %v50
    %53 = vst [vmem:[#allocation5] sm:$0x3] %v52
    // Predicated region
    $region14: #{tpu_custom_call.1} parent=1 // pred_check
      %p54 = pneg %p23
    $region15: #{tpu_custom_call.1} parent=1 // pred_check_branch
      %56 = sbr.rel (%p54) target = $region17
    $region16: #{tpu_custom_call.1} parent=1 // pred_region
      %v57 = vld [vmem:[#allocation5] sm:$0x3]
      %v58 = vmul.f32 %v57, 0.0625
      %59 = vst [vmem:[#allocation5] sm:$0x3] %v58
    $region17: #{tpu_custom_call.1} parent=1 // pred_fallthru
      _
    // Predicated region
    $region18: #{tpu_custom_call.1} parent=1 // pred_check
      _
    $region19: #{tpu_custom_call.1} parent=1 // pred_check_branch
      %61 = sbr.rel (0) target = $region21
    $region20: #{tpu_custom_call.1} parent=1 // pred_region
      %s63 = ssub.s32 32, 32
      %64 = vsyncadd [#allocation4], %s63
      %s66 = sshll.u32 [#allocation5], 4
      %s67 = int_to_ptr.vmem [resolvable:$true] %s66
      %69 = dma.vmem_to_hbm [thread:$0]  %s67, 32, %s1, [#allocation4]
    $region21: #{tpu_custom_call.1} parent=1 // pred_fallthru
      _
    // Predicated region
    $region22: #{tpu_custom_call.1} parent=1 // pred_check
      _
    $region23: #{tpu_custom_call.1} parent=1 // pred_check_branch
      %71 = sbr.rel (0) target = $region25
    $region24: #{tpu_custom_call.1} parent=1 // pred_region
      %72 = dma.done [#allocation4], 32
    $region25: #{tpu_custom_call.1} parent=1 // pred_fallthru
      _
    %73 = vsyncpa [#allocation3], 1
    %74 = vsyncpa [#allocation4], 1

</llo_original>
